<compile_context>
chip_gen: v7x
topology: tpu7x:2x2x1
jax: 0.10.0
libtpu: 0.0.40
codegen_flags: <defaults>
</compile_context>

<pallas_src>
from typing import NamedTuple

import jax
import jax.numpy as jnp
from jax.experimental import pallas as pl
from jax.experimental.pallas import tpu as pltpu


def _round_up(n, m):
    return ((n + m - 1) // m) * m


class PreparedClassBlock(NamedTuple):
    """BN-folded, 128-padded, (optionally bf16-cast) ClassBlock weights."""
    w1: jax.Array   # (D, Hp)  compute dtype, BN folded in
    b1: jax.Array   # (1, Hp)  f32, BN folded in
    w2: jax.Array   # (Hp, Cp) compute dtype
    b2: jax.Array   # (1, Cp)  f32
    H: int          # true bottleneck dim
    C: int          # true class count


def prepare_class_block_params(params, *, eps=1e-5, compute_dtype=jnp.float32):
    """One-time host-side preprocessing: BN fold + lane-dense padding + cast."""
    w1, b1, gamma, beta, mean, var, w2, b2 = params
    D, H = w1.shape
    C = w2.shape[1]

    # BN folding (inference running stats): f = x @ W1' + b1'
    s = gamma / jnp.sqrt(var + eps)                       # (H,)
    w1f = (w1 * s[None, :]).astype(jnp.float32)           # (D, H)
    b1f = ((b1 - mean) * s + beta).astype(jnp.float32)    # (H,)

    # Pad H and C up to multiples of 128 so all stores are lane-dense.
    Hp = _round_up(H, 128)
    Cp = _round_up(C, 128)
    if Hp != H:
        w1f = jnp.pad(w1f, ((0, 0), (0, Hp - H)))
        b1f = jnp.pad(b1f, (0, Hp - H))
        w2 = jnp.pad(w2, ((0, Hp - H), (0, 0)))
    if Cp != C:
        w2 = jnp.pad(w2, ((0, 0), (0, Cp - C)))
        b2 = jnp.pad(b2, (0, Cp - C))

    return PreparedClassBlock(
        w1=w1f.astype(compute_dtype),
        b1=b1f.reshape(1, Hp).astype(jnp.float32),
        w2=w2.astype(compute_dtype),
        b2=b2.reshape(1, Cp).astype(jnp.float32),
        H=H, C=C,
    )


def _class_block_kernel(x_ref, w1_ref, b1_ref, w2_ref, b2_ref,
                        out_ref, feat_ref, f_ref):
    # j == 0: compute the bottleneck feature once per batch tile, keep it in
    # VMEM scratch for all class tiles, and write the (j-constant) feat output.
    @pl.when(pl.program_id(1) == 0)
    def _():
        f = jnp.dot(x_ref[...], w1_ref[...], preferred_element_type=jnp.float32)
        f = f + b1_ref[...]                     # (1, Hp) broadcast, f32 bias add
        f_ref[...] = f
        feat_ref[...] = f.astype(feat_ref.dtype)
    # Dropout(p=0.5) -> identity in eval mode.

    # Classifier Linear for this class tile: (bm, Hp) @ (Hp, tn) -> (bm, tn).
    f = f_ref[...]
    y = jnp.dot(f.astype(w2_ref.dtype), w2_ref[...],
                preferred_element_type=jnp.float32)
    out_ref[...] = (y + b2_ref[...]).astype(out_ref.dtype)


def _pick_bm(B, block_m):
    """Batch tile: full tile for small B, else prefer a divisor of B."""
    if B <= block_m:
        return B
    for cand in range(block_m, max(block_m // 2, 8) - 1, -8):
        if B % cand == 0:
            return cand
    return block_m          # last tile partially masked — acceptable


def _pick_tn(Cp, block_n):
    """Class tile: whole Cp if it fits the budget, else a 128-multiple divisor."""
    if Cp <= block_n:
        return Cp
    tn = (block_n // 128) * 128
    while Cp % tn != 0:
        tn -= 128
    return tn


def _estimate_vmem_bytes(bm, D, Hp, tn, nc, c_bytes, o_bytes):
    x_tile = bm * D * c_bytes * 2                 # pipelined input (2 buffers)
    w1 = D * Hp * c_bytes                         # Buffered(1), resident
    b1 = Hp * 4
    w2_bufs = 1 if nc == 1 else 2
    w2 = Hp * tn * c_bytes * w2_bufs
    b2 = tn * 4 * w2_bufs
    out = bm * tn * o_bytes * 2
    feat = bm * Hp * o_bytes * 2
    scratch = bm * Hp * 4
    return x_tile + w1 + b1 + w2 + b2 + out + feat + scratch


def class_block_forward(x, prep: PreparedClassBlock, *,
                        block_m=256, block_n=2048, return_padded=False):
    """Fused ClassBlock forward. x: (B, input_dim). Returns (logits, feat)."""
    B, D = x.shape
    H, C = prep.H, prep.C
    Hp = prep.w1.shape[1]
    Cp = prep.w2.shape[1]

    cdtype = prep.w1.dtype
    out_dtype = x.dtype
    x_c = x if x.dtype == cdtype else x.astype(cdtype)

    bm = _pick_bm(B, block_m)
    tn = _pick_tn(Cp, block_n)
    nb = pl.cdiv(B, bm)
    nc = Cp // tn
    grid = (nb, nc)

    c_bytes = jnp.dtype(cdtype).itemsize
    o_bytes = jnp.dtype(out_dtype).itemsize
    est = _estimate_vmem_bytes(bm, D, Hp, tn, nc, c_bytes, o_bytes)
    vmem_limit = min(max(32 << 20, 2 * est + (8 << 20)), 96 << 20)

    const_spec = lambda shape: pl.BlockSpec(shape, lambda i, j: (0, 0),
                                            pipeline_mode=pl.Buffered(1))
    w2_mode = pl.Buffered(1) if nc == 1 else pl.Buffered(2)

    out_p, feat_p = pl.pallas_call(
        _class_block_kernel,
        out_shape=(
            jax.ShapeDtypeStruct((B, Cp), out_dtype),     # logits (padded)
            jax.ShapeDtypeStruct((B, Hp), out_dtype),     # bottleneck feature (padded)
        ),
        grid_spec=pltpu.PrefetchScalarGridSpec(
            num_scalar_prefetch=0,
            grid=grid,
            in_specs=[
                pl.BlockSpec((bm, D), lambda i, j: (i, 0)),   # x tile (batch-pipelined)
                const_spec((D, Hp)),                           # folded W1 (resident, 1 buf)
                const_spec((1, Hp)),                           # folded b1
                pl.BlockSpec((Hp, tn), lambda i, j: (0, j),
                             pipeline_mode=w2_mode),           # W2 (class-tiled)
                pl.BlockSpec((1, tn), lambda i, j: (0, j),
                             pipeline_mode=w2_mode),           # b2
            ],
            out_specs=[
                pl.BlockSpec((bm, tn), lambda i, j: (i, j)),
                pl.BlockSpec((bm, Hp), lambda i, j: (i, 0)),   # constant over j
            ],
            scratch_shapes=[pltpu.VMEM((bm, Hp), jnp.float32)],
        ),
        compiler_params=pltpu.CompilerParams(
            dimension_semantics=("parallel", "arbitrary"),
            vmem_limit_bytes=int(vmem_limit),
        ),
    )(x_c, prep.w1, prep.b1, prep.w2, prep.b2)

    if return_padded:
        return out_p, feat_p
    out = out_p if Cp == C else out_p[:, :C]
    feat = feat_p if Hp == H else feat_p[:, :H]
    return out, feat


def init_class_block_params(key, input_dim, num_bottleneck, class_num):
    """Deterministic init mirroring weights_init_kaiming / weights_init_classifier."""
    k1, k2, k3 = jax.random.split(key, 3)
    # add_block Linear: kaiming_normal_(mode='fan_out') -> std = sqrt(2/fan_out).
    std1 = (2.0 / num_bottleneck) ** 0.5
    w1 = std1 * jax.random.normal(k1, (input_dim, num_bottleneck), jnp.float32)
    b1 = jnp.zeros((num_bottleneck,), jnp.float32)
    # BatchNorm1d: weight ~ N(1.0, 0.01), bias = 0, running stats fresh (0, 1).
    gamma = 1.0 + 0.01 * jax.random.normal(k2, (num_bottleneck,), jnp.float32)
    beta = jnp.zeros((num_bottleneck,), jnp.float32)
    mean = jnp.zeros((num_bottleneck,), jnp.float32)
    var = jnp.ones((num_bottleneck,), jnp.float32)
    # classifier Linear: normal(std=0.001), bias = 0.
    w2 = 0.001 * jax.random.normal(k3, (num_bottleneck, class_num), jnp.float32)
    b2 = jnp.zeros((class_num,), jnp.float32)
    return (w1, b1, gamma, beta, mean, var, w2, b2)


def _reference_forward(x, params, eps=1e-5):
    w1, b1, gamma, beta, mean, var, w2, b2 = params
    h = x @ w1 + b1
    f = gamma * (h - mean) / jnp.sqrt(var + eps) + beta
    y = f @ w2 + b2
    return y, f


if __name__ == "__main__":
    key = jax.random.PRNGKey(0)
    kx, kp = jax.random.split(key)

    # Small shapes consistent with ClassBlock(input_dim, class_num).
    batch, input_dim, num_bottleneck, class_num = 8, 256, 128, 64

    x = jax.random.normal(kx, (batch, input_dim), jnp.float32)
    params = init_class_block_params(kp, input_dim, num_bottleneck, class_num)
    ref_logits, ref_feat = _reference_forward(x, params)

    # --- f32 compute path (tight tolerance) --------------------------------
    prep32 = prepare_class_block_params(params, compute_dtype=jnp.float32)
    fwd32 = jax.jit(lambda xx: class_block_forward(xx, prep32))
    logits, feat = fwd32(x)
    jax.block_until_ready((logits, feat))
    assert logits.shape == (batch, class_num)
    assert feat.shape == (batch, num_bottleneck)
    assert jnp.allclose(logits, ref_logits, atol=1e-4, rtol=1e-4)
    assert jnp.allclose(feat, ref_feat, atol=1e-4, rtol=1e-4)

    # --- bf16 compute path (fast path: half the DMA bytes, bf16 MXU peak) ---
    prep16 = prepare_class_block_params(params, compute_dtype=jnp.bfloat16)
    fwd16 = jax.jit(lambda xx: class_block_forward(xx, prep16))
    logits16, feat16 = fwd16(x)
    jax.block_until_ready((logits16, feat16))
    assert logits16.shape == (batch, class_num)
    assert feat16.shape == (batch, num_bottleneck)
    assert jnp.allclose(logits16, ref_logits, atol=1e-1, rtol=5e-2)
    assert jnp.allclose(feat16, ref_feat, atol=1e-1, rtol=5e-2)

    print("KERNEL_OK")
</pallas_src>

<mosaic_0001>
module attributes {stable_mosaic.version = 11 : i64} {
  func.func @_class_block_kernel(%arg0: i32, %arg1: i32, %arg2: memref<8x256xf32, #tpu.memory_space<vmem>>, %arg3: memref<256x128xf32, #tpu.memory_space<vmem>>, %arg4: memref<1x128xf32, #tpu.memory_space<vmem>>, %arg5: memref<128x128xf32, #tpu.memory_space<vmem>>, %arg6: memref<1x128xf32, #tpu.memory_space<vmem>>, %arg7: memref<8x128xf32, #tpu.memory_space<vmem>>, %arg8: memref<8x128xf32, #tpu.memory_space<vmem>>, %arg9: memref<8x128xf32, #tpu.memory_space<vmem>>) attributes {dimension_semantics = [#tpu.dimension_semantics<parallel>, #tpu.dimension_semantics<arbitrary>], iteration_bounds = array<i64: 1, 1>, scalar_prefetch = 0 : i64, scratch_operands = 1 : i64, tpu.core_type = #tpu.core_type<tc>, window_params = [{transform_indices = @transform_0, window_bounds = array<i64: 8, 256>}, {pipeline_mode = #tpu.pipeline_mode<synchronous>, transform_indices = @transform_1, window_bounds = array<i64: 256, 128>}, {pipeline_mode = #tpu.pipeline_mode<synchronous>, transform_indices = @transform_2, window_bounds = array<i64: 1, 128>}, {pipeline_mode = #tpu.pipeline_mode<synchronous>, transform_indices = @transform_3, window_bounds = array<i64: 128, 128>}, {pipeline_mode = #tpu.pipeline_mode<synchronous>, transform_indices = @transform_4, window_bounds = array<i64: 1, 128>}, {transform_indices = @transform_5, window_bounds = array<i64: 8, 128>}, {transform_indices = @transform_6, window_bounds = array<i64: 8, 128>}]} {
    %c0_i32 = arith.constant 0 : i32
    %0 = arith.cmpi eq, %arg1, %c0_i32 : i32
    %1 = arith.extui %0 : i1 to i32
    %c0_i32_0 = arith.constant 0 : i32
    %2 = arith.cmpi ne, %1, %c0_i32_0 : i32
    scf.if %2 {
      %c0_8 = arith.constant 0 : index
      %c0_9 = arith.constant 0 : index
      %10 = vector.load %arg2[%c0_8, %c0_9] : memref<8x256xf32, #tpu.memory_space<vmem>>, vector<8x256xf32>
      %c0_10 = arith.constant 0 : index
      %c0_11 = arith.constant 0 : index
      %11 = vector.load %arg3[%c0_10, %c0_11] : memref<256x128xf32, #tpu.memory_space<vmem>>, vector<256x128xf32>
      %cst_12 = arith.constant dense<0.000000e+00> : vector<8x128xf32>
      %12 = tpu.matmul %10, %11, %cst_12 {dimension_numbers = #tpu.dot_dimension_numbers<[1], [0], [0], [1], [0, 0, 1, 1], [], []>} : vector<8x256xf32>, vector<256x128xf32>, vector<8x128xf32> -> vector<8x128xf32>
      %c0_13 = arith.constant 0 : index
      %c0_14 = arith.constant 0 : index
      %13 = vector.load %arg4[%c0_13, %c0_14] : memref<1x128xf32, #tpu.memory_space<vmem>>, vector<1x128xf32>
      %14 = vector.broadcast %13 : vector<1x128xf32> to vector<8x128xf32>
      %15 = arith.addf %12, %14 : vector<8x128xf32>
      %c0_15 = arith.constant 0 : index
      %c0_16 = arith.constant 0 : index
      %16 = vector.load %arg9[%c0_15, %c0_16] : memref<8x128xf32, #tpu.memory_space<vmem>>, vector<8x128xf32>
      tpu.vector_store %arg9[%c0_15, %c0_16], %15 {strides = array<i32>} : memref<8x128xf32, #tpu.memory_space<vmem>>, vector<8x128xf32>,
      %c0_17 = arith.constant 0 : index
      %c0_18 = arith.constant 0 : index
      %17 = vector.load %arg8[%c0_17, %c0_18] : memref<8x128xf32, #tpu.memory_space<vmem>>, vector<8x128xf32>
      tpu.vector_store %arg8[%c0_17, %c0_18], %15 {strides = array<i32>} : memref<8x128xf32, #tpu.memory_space<vmem>>, vector<8x128xf32>,
    } else {
    }
    %c0 = arith.constant 0 : index
    %c0_1 = arith.constant 0 : index
    %3 = vector.load %arg9[%c0, %c0_1] : memref<8x128xf32, #tpu.memory_space<vmem>>, vector<8x128xf32>
    %c0_2 = arith.constant 0 : index
    %c0_3 = arith.constant 0 : index
    %4 = vector.load %arg5[%c0_2, %c0_3] : memref<128x128xf32, #tpu.memory_space<vmem>>, vector<128x128xf32>
    %cst = arith.constant dense<0.000000e+00> : vector<8x128xf32>
    %5 = tpu.matmul %3, %4, %cst {dimension_numbers = #tpu.dot_dimension_numbers<[1], [0], [0], [1], [0, 0, 1, 1], [], []>} : vector<8x128xf32>, vector<128x128xf32>, vector<8x128xf32> -> vector<8x128xf32>
    %c0_4 = arith.constant 0 : index
    %c0_5 = arith.constant 0 : index
    %6 = vector.load %arg6[%c0_4, %c0_5] : memref<1x128xf32, #tpu.memory_space<vmem>>, vector<1x128xf32>
    %7 = vector.broadcast %6 : vector<1x128xf32> to vector<8x128xf32>
    %8 = arith.addf %5, %7 : vector<8x128xf32>
    %c0_6 = arith.constant 0 : index
    %c0_7 = arith.constant 0 : index
    %9 = vector.load %arg7[%c0_6, %c0_7] : memref<8x128xf32, #tpu.memory_space<vmem>>, vector<8x128xf32>
    tpu.vector_store %arg7[%c0_6, %c0_7], %8 {strides = array<i32>} : memref<8x128xf32, #tpu.memory_space<vmem>>, vector<8x128xf32>,
    return
  }
  func.func @transform_0(%arg0: i32, %arg1: i32) -> (i32, i32) {
    %c0_i32 = arith.constant 0 : i32
    %c0_i32_0 = arith.constant 0 : i32
    return %arg0, %c0_i32 : i32, i32
  }
  func.func @transform_1(%arg0: i32, %arg1: i32) -> (i32, i32) {
    %c0_i32 = arith.constant 0 : i32
    %c0_i32_0 = arith.constant 0 : i32
    %c0_i32_1 = arith.constant 0 : i32
    return %c0_i32, %c0_i32_0 : i32, i32
  }
  func.func @transform_2(%arg0: i32, %arg1: i32) -> (i32, i32) {
    %c0_i32 = arith.constant 0 : i32
    %c0_i32_0 = arith.constant 0 : i32
    %c0_i32_1 = arith.constant 0 : i32
    return %c0_i32, %c0_i32_0 : i32, i32
  }
  func.func @transform_3(%arg0: i32, %arg1: i32) -> (i32, i32) {
    %c0_i32 = arith.constant 0 : i32
    %c0_i32_0 = arith.constant 0 : i32
    return %c0_i32, %arg1 : i32, i32
  }
  func.func @transform_4(%arg0: i32, %arg1: i32) -> (i32, i32) {
    %c0_i32 = arith.constant 0 : i32
    %c0_i32_0 = arith.constant 0 : i32
    return %c0_i32, %arg1 : i32, i32
  }
  func.func @transform_5(%arg0: i32, %arg1: i32) -> (i32, i32) {
    %c0_i32 = arith.constant 0 : i32
    return %arg0, %arg1 : i32, i32
  }
  func.func @transform_6(%arg0: i32, %arg1: i32) -> (i32, i32) {
    %c0_i32 = arith.constant 0 : i32
    %c0_i32_0 = arith.constant 0 : i32
    return %arg0, %c0_i32 : i32, i32
  }
}

</mosaic_0001>

<llo_original>
// kernel: _lambda_.1
$region0: #{_lambda_.1}
  #allocation0 [shape = 'u32[]', space=smem, size = 0x4, offset = 0x4, fixed_abs, tag = 'smem constant byte address 0x4 - core index']
  #allocation1 [shape = 'u32[144,128]{1,0:T(1,128)}', space=vmem, size = 0x12000, scoped, tag = 'internal scratch']
  #allocation2 [shape = 'f32[8,128]{1,0:T(8,128)}', space=vmem, size = 0x1000, scoped, tag = 'scratch operand']
  %s0 = inlined_call_operand.hbm [shape: f32[8,256], index: 0, kind: input, shape index: {}]
  %s1 = inlined_call_operand.hbm [shape: f32[256,128], index: 1, kind: input, shape index: {}]
  %s2 = inlined_call_operand.vmem [shape: f32[1,128], index: 2, kind: input, shape index: {}, may-alias: {2,4}]
  %s3 = inlined_call_operand.hbm [shape: f32[128,128], index: 3, kind: input, shape index: {}]
  %s4 = inlined_call_operand.vmem [shape: f32[1,128], index: 4, kind: input, shape index: {}, may-alias: {2,4}]
  %s5 = inlined_call_operand.hbm [shape: f32[8,128], index: 5, kind: output, shape index: {0}]
  %s6 = inlined_call_operand.hbm [shape: f32[8,128], index: 6, kind: output, shape index: {1}]
  %7 = xla_tuple %s5, %s6
  %s8 = sld [smem:[#allocation0]]
  $region54: #{_lambda_.1} parent=0
    _
  %s10 = ssub.s32 1, %s8
  %s11 = scalar_select 0, %s10, %s8
  $region1: #{_lambda_.1} parent=0
    #allocation3 [shape = 'u8[8192]{0}', space=vmem, size = 0x2000, scoped, tag = 'input window, operand 0, single buffered']
    #allocation4 [shape = 's32[1]{0}', space=sflag, size = 0x4, scoped, tag = 'scoped memory for _lambda_.1']
    #allocation5 [shape = 's32[1]{0}', space=sflag, size = 0x4, scoped, tag = 'scoped memory for _lambda_.1']
    #allocation6 [shape = 'u8[131072]{0}', space=vmem, size = 0x20000, scoped, tag = 'input window, operand 1, single buffered']
    #allocation7 [shape = 's32[1]{0}', space=sflag, size = 0x4, scoped, tag = 'scoped memory for _lambda_.1']
    #allocation8 [shape = 'u8[65536]{0}', space=vmem, size = 0x10000, scoped, tag = 'input window, operand 3, single buffered']
    #allocation9 [shape = 'u8[4096]{0}', space=vmem, size = 0x1000, scoped, tag = 'output window, operand 0, single buffered']
    #allocation10 [shape = 'u8[4096]{0}', space=vmem, size = 0x1000, scoped, tag = 'output window, operand 1, single buffered']
    #allocation11 [shape = 's32[1]{0}', space=sflag, size = 0x4, scoped, tag = 'scoped memory for _lambda_.1']
    %12 = vsyncpa [#allocation4], 0
    %13 = vsyncpa [#allocation7], 0
    %14 = vsyncpa [#allocation5], 0
    %15 = vsyncpa [#allocation11], 0
    // Predicated region
    $region2: #{_lambda_.1} parent=1 // pred_check
      _
    $region3: #{_lambda_.1} parent=1 // pred_check_branch
      %17 = sbr.rel (0) target = $region5
    $region4: #{_lambda_.1} parent=1 // pred_region
      %s19 = ssub.s32 256, 256
      %20 = vsyncadd [#allocation4], %s19
      %s22 = sshll.u32 [#allocation3], 4
      %s23 = int_to_ptr.vmem [resolvable:$true] %s22
      %25 = dma.hbm_to_vmem [thread:$0]  %s0, 256, %s23, [#allocation4]
    $region5: #{_lambda_.1} parent=1 // pred_fallthru
      _
    // Predicated region
    $region6: #{_lambda_.1} parent=1 // pred_check
      _
    $region7: #{_lambda_.1} parent=1 // pred_check_branch
      %27 = sbr.rel (0) target = $region9
    $region8: #{_lambda_.1} parent=1 // pred_region
      %s29 = ssub.s32 4096, 4096
      %30 = vsyncadd [#allocation7], %s29
      %s31 = sshll.u32 [#allocation6], 4
      %s32 = int_to_ptr.vmem [resolvable:$true] %s31
      %37 = dma.hbm_to_vmem [thread:$0]  %s1, 4096, %s32, [#allocation7], 128, 128, 8
    $region9: #{_lambda_.1} parent=1 // pred_fallthru
      _
    // Predicated region
    $region10: #{_lambda_.1} parent=1 // pred_check
      _
    $region11: #{_lambda_.1} parent=1 // pred_check_branch
      %39 = sbr.rel (0) target = $region13
    $region12: #{_lambda_.1} parent=1 // pred_region
      _
    $region13: #{_lambda_.1} parent=1 // pred_fallthru
      _
    // Predicated region
    $region14: #{_lambda_.1} parent=1 // pred_check
      _
    $region15: #{_lambda_.1} parent=1 // pred_check_branch
      %41 = sbr.rel (0) target = $region17
    $region16: #{_lambda_.1} parent=1 // pred_region
      %s43 = ssub.s32 2048, 2048
      %44 = vsyncadd [#allocation7], %s43
      %s45 = sshll.u32 [#allocation8], 4
      %s46 = int_to_ptr.vmem [resolvable:$true] %s45
      %51 = dma.hbm_to_vmem [thread:$0]  %s3, 2048, %s46, [#allocation7], 128, 128, 8
    $region17: #{_lambda_.1} parent=1 // pred_fallthru
      _
    // Predicated region
    $region18: #{_lambda_.1} parent=1 // pred_check
      _
    $region19: #{_lambda_.1} parent=1 // pred_check_branch
      %53 = sbr.rel (0) target = $region21
    $region20: #{_lambda_.1} parent=1 // pred_region
      _
    $region21: #{_lambda_.1} parent=1 // pred_fallthru
      _
    // Predicated region
    $region22: #{_lambda_.1} parent=1 // pred_check
      _
    $region23: #{_lambda_.1} parent=1 // pred_check_branch
      %55 = sbr.rel (0) target = $region25
    $region24: #{_lambda_.1} parent=1 // pred_region
      %56 = dma.done [#allocation4], 256
    $region25: #{_lambda_.1} parent=1 // pred_fallthru
      _
    // Predicated region
    $region26: #{_lambda_.1} parent=1 // pred_check
      _
    $region27: #{_lambda_.1} parent=1 // pred_check_branch
      %58 = sbr.rel (0) target = $region29
    $region28: #{_lambda_.1} parent=1 // pred_region
      %59 = dma.done [#allocation7], 4096
    $region29: #{_lambda_.1} parent=1 // pred_fallthru
      _
    // Predicated region
    $region30: #{_lambda_.1} parent=1 // pred_check
      _
    $region31: #{_lambda_.1} parent=1 // pred_check_branch
      %61 = sbr.rel (0) target = $region33
    $region32: #{_lambda_.1} parent=1 // pred_region
      %62 = dma.done [#allocation7], 2048
    $region33: #{_lambda_.1} parent=1 // pred_fallthru
      _
    %p63 = scmp.eq.s32.totalorder 0, 0
    // Predicated region
    $region34: #{_lambda_.1} parent=1 // pred_check
      %p64 = pneg %p63
    $region35: #{_lambda_.1} parent=1 // pred_check_branch
      %66 = sbr.rel (%p64) target = $region37
    $region36: #{_lambda_.1} parent=1 // pred_region
      %v67 = vld [vmem:[#allocation3] sm:$0xff]
      %v68 = vld [vmem:[#allocation3 + $0x8] sm:$0xff]
      %v69 = vld [vmem:[#allocation6] sm:$0xff]
      %v70 = vld [vmem:[#allocation6 + $0x8] sm:$0xff]
      %v71 = vld [vmem:[#allocation6 + $0x10] sm:$0xff]
      %v72 = vld [vmem:[#allocation6 + $0x18] sm:$0xff]
      %v73 = vld [vmem:[#allocation6 + $0x20] sm:$0xff]
      %v74 = vld [vmem:[#allocation6 + $0x28] sm:$0xff]
      %v75 = vld [vmem:[#allocation6 + $0x30] sm:$0xff]
      %v76 = vld [vmem:[#allocation6 + $0x38] sm:$0xff]
      %v77 = vld [vmem:[#allocation6 + $0x40] sm:$0xff]
      %v78 = vld [vmem:[#allocation6 + $0x48] sm:$0xff]
      %v79 = vld [vmem:[#allocation6 + $0x50] sm:$0xff]
      %v80 = vld [vmem:[#allocation6 + $0x58] sm:$0xff]
      %v81 = vld [vmem:[#allocation6 + $0x60] sm:$0xff]
      %v82 = vld [vmem:[#allocation6 + $0x68] sm:$0xff]
      %v83 = vld [vmem:[#allocation6 + $0x70] sm:$0xff]
      %v84 = vld [vmem:[#allocation6 + $0x78] sm:$0xff]
      %v85 = vld [vmem:[#allocation6 + $0x80] sm:$0xff]
      %v86 = vld [vmem:[#allocation6 + $0x88] sm:$0xff]
      %v87 = vld [vmem:[#allocation6 + $0x90] sm:$0xff]
      %v88 = vld [vmem:[#allocation6 + $0x98] sm:$0xff]
      %v89 = vld [vmem:[#allocation6 + $0xa0] sm:$0xff]
      %v90 = vld [vmem:[#allocation6 + $0xa8] sm:$0xff]
      %v91 = vld [vmem:[#allocation6 + $0xb0] sm:$0xff]
      %v92 = vld [vmem:[#allocation6 + $0xb8] sm:$0xff]
      %v93 = vld [vmem:[#allocation6 + $0xc0] sm:$0xff]
      %v94 = vld [vmem:[#allocation6 + $0xc8] sm:$0xff]
      %v95 = vld [vmem:[#allocation6 + $0xd0] sm:$0xff]
      %v96 = vld [vmem:[#allocation6 + $0xd8] sm:$0xff]
      %v97 = vld [vmem:[#allocation6 + $0xe0] sm:$0xff]
      %v98 = vld [vmem:[#allocation6 + $0xe8] sm:$0xff]
      %v99 = vld [vmem:[#allocation6 + $0xf0] sm:$0xff]
      %v100 = vld [vmem:[#allocation6 + $0xf8] sm:$0xff]
      %v101 = vld [vmem:[%s2] sm:$0x1]
      %v103 = vlaneseq
      %v104 = vshrl.u32 %v103, 7
      %v105 = vsub.s32 0, %v104
      %v106 = vrot.slane %v101, %v105
      %108 = vmatprep.subr.mxu0 0.0
      %109 = vmatpush1.msra.mxu0 %v69
      %110 = vmatprep.subr.mxu0 0.0
      %111 = vmatpush1.msra.mxu0 %v70
      %112 = vmatprep.subr.mxu0 0.0
      %113 = vmatpush1.msra.mxu0 %v71
      %114 = vmatprep.subr.mxu0 0.0
      %115 = vmatpush1.msra.mxu0 %v72
      %116 = vmatprep.subr.mxu0 0.0
      %117 = vmatpush1.msra.mxu0 %v73
      %118 = vmatprep.subr.mxu0 0.0
      %119 = vmatpush1.msra.mxu0 %v74
      %120 = vmatprep.subr.mxu0 0.0
      %121 = vmatpush1.msra.mxu0 %v75
      %122 = vmatprep.subr.mxu0 0.0
      %123 = vmatpush1.msra.mxu0 %v76
      %124 = vmatprep.subr.mxu0 0.0
      %125 = vmatpush1.msra.mxu0 %v77
      %126 = vmatprep.subr.mxu0 0.0
      %127 = vmatpush1.msra.mxu0 %v78
      %128 = vmatprep.subr.mxu0 0.0
      %129 = vmatpush1.msra.mxu0 %v79
      %130 = vmatprep.subr.mxu0 0.0
      %131 = vmatpush1.msra.mxu0 %v80
      %132 = vmatprep.subr.mxu0 0.0
      %133 = vmatpush1.msra.mxu0 %v81
      %134 = vmatprep.subr.mxu0 0.0
      %135 = vmatpush1.msra.mxu0 %v82
      %136 = vmatprep.subr.mxu0 0.0
      %137 = vmatpush1.msra.mxu0 %v83
      %138 = vmatprep.subr.mxu0 0.0
      %139 = vmatpush1.msra.mxu0 %v84
      %140 = vmatprep.subr.mxu0 0.0
      %141 = vmatpush1.msra.mxu0 %v85
      %142 = vmatprep.subr.mxu0 0.0
      %143 = vmatpush1.msra.mxu0 %v86
      %144 = vmatprep.subr.mxu0 0.0
      %145 = vmatpush1.msra.mxu0 %v87
      %146 = vmatprep.subr.mxu0 0.0
      %147 = vmatpush1.msra.mxu0 %v88
      %148 = vmatprep.subr.mxu0 0.0
      %149 = vmatpush1.msra.mxu0 %v89
      %150 = vmatprep.subr.mxu0 0.0
      %151 = vmatpush1.msra.mxu0 %v90
      %152 = vmatprep.subr.mxu0 0.0
      %153 = vmatpush1.msra.mxu0 %v91
      %154 = vmatprep.subr.mxu0 0.0
      %155 = vmatpush1.msra.mxu0 %v92
      %156 = vmatprep.subr.mxu0 0.0
      %157 = vmatpush1.msra.mxu0 %v93
      %158 = vmatprep.subr.mxu0 0.0
      %159 = vmatpush1.msra.mxu0 %v94
      %160 = vmatprep.subr.mxu0 0.0
      %161 = vmatpush1.msra.mxu0 %v95
      %162 = vmatprep.subr.mxu0 0.0
      %163 = vmatpush1.msra.mxu0 %v96
      %164 = vmatprep.subr.mxu0 0.0
      %165 = vmatpush1.msra.mxu0 %v97
      %166 = vmatprep.subr.mxu0 0.0
      %167 = vmatpush1.msra.mxu0 %v98
      %168 = vmatprep.subr.mxu0 0.0
      %169 = vmatpush1.msra.mxu0 %v99
      %170 = vmatprep.subr.mxu0 0.0
      %171 = vmatpush1.msra.mxu0 %v100
      %172 = vmatprep.mubr.f32.mxu0 %v68
      %173 = vmatmul.mubr.f32.gmra.mrb[0].mxu0 %v67
      %v174 = vpop.f32.mrb[0].mxu0
      %v175 = vadd.f32 %v106, %v174
      %v176 = vpop.f32.mrb[0].mxu0
      %177 = vdwg.mxu0
      %178 = vst [vmem:[#allocation2] sm:$0xff] %v175
      %179 = vst [vmem:[#allocation10] sm:$0xff] %v175
    $region37: #{_lambda_.1} parent=1 // pred_fallthru
      _
    %v180 = vld [vmem:[#allocation2] sm:$0xff]
    %v181 = vld [vmem:[#allocation8] sm:$0xff]
    %v182 = vld [vmem:[#allocation8 + $0x8] sm:$0xff]
    %v183 = vld [vmem:[#allocation8 + $0x10] sm:$0xff]
    %v184 = vld [vmem:[#allocation8 + $0x18] sm:$0xff]
    %v185 = vld [vmem:[#allocation8 + $0x20] sm:$0xff]
    %v186 = vld [vmem:[#allocation8 + $0x28] sm:$0xff]
    %v187 = vld [vmem:[#allocation8 + $0x30] sm:$0xff]
    %v188 = vld [vmem:[#allocation8 + $0x38] sm:$0xff]
    %v189 = vld [vmem:[#allocation8 + $0x40] sm:$0xff]
    %v190 = vld [vmem:[#allocation8 + $0x48] sm:$0xff]
    %v191 = vld [vmem:[#allocation8 + $0x50] sm:$0xff]
    %v192 = vld [vmem:[#allocation8 + $0x58] sm:$0xff]
    %v193 = vld [vmem:[#allocation8 + $0x60] sm:$0xff]
    %v194 = vld [vmem:[#allocation8 + $0x68] sm:$0xff]
    %v195 = vld [vmem:[#allocation8 + $0x70] sm:$0xff]
    %v196 = vld [vmem:[#allocation8 + $0x78] sm:$0xff]
    %v197 = vld [vmem:[%s4] sm:$0x1]
    %v199 = vlaneseq
    %v200 = vshrl.u32 %v199, 7
    %v201 = vsub.s32 0, %v200
    %v202 = vrot.slane %v197, %v201
    %204 = vmatprep.subr.mxu0 0.0
    %205 = vmatpush1.msra.mxu0 %v181
    %206 = vmatprep.subr.mxu0 0.0
    %207 = vmatpush1.msra.mxu0 %v182
    %208 = vmatprep.subr.mxu0 0.0
    %209 = vmatpush1.msra.mxu0 %v183
    %210 = vmatprep.subr.mxu0 0.0
    %211 = vmatpush1.msra.mxu0 %v184
    %212 = vmatprep.subr.mxu0 0.0
    %213 = vmatpush1.msra.mxu0 %v185
    %214 = vmatprep.subr.mxu0 0.0
    %215 = vmatpush1.msra.mxu0 %v186
    %216 = vmatprep.subr.mxu0 0.0
    %217 = vmatpush1.msra.mxu0 %v187
    %218 = vmatprep.subr.mxu0 0.0
    %219 = vmatpush1.msra.mxu0 %v188
    %220 = vmatprep.subr.mxu0 0.0
    %221 = vmatpush1.msra.mxu0 %v189
    %222 = vmatprep.subr.mxu0 0.0
    %223 = vmatpush1.msra.mxu0 %v190
    %224 = vmatprep.subr.mxu0 0.0
    %225 = vmatpush1.msra.mxu0 %v191
    %226 = vmatprep.subr.mxu0 0.0
    %227 = vmatpush1.msra.mxu0 %v192
    %228 = vmatprep.subr.mxu0 0.0
    %229 = vmatpush1.msra.mxu0 %v193
    %230 = vmatprep.subr.mxu0 0.0
    %231 = vmatpush1.msra.mxu0 %v194
    %232 = vmatprep.subr.mxu0 0.0
    %233 = vmatpush1.msra.mxu0 %v195
    %234 = vmatprep.subr.mxu0 0.0
    %235 = vmatpush1.msra.mxu0 %v196
    %236 = vmatprep.subr.mxu0 0.0
    %237 = vmatpush1.msra.mxu0 0.0
    %238 = vmatprep.subr.mxu0 0.0
    %239 = vmatpush1.msra.mxu0 0.0
    %240 = vmatprep.subr.mxu0 0.0
    %241 = vmatpush1.msra.mxu0 0.0
    %242 = vmatprep.subr.mxu0 0.0
    %243 = vmatpush1.msra.mxu0 0.0
    %244 = vmatprep.subr.mxu0 0.0
    %245 = vmatpush1.msra.mxu0 0.0
    %246 = vmatprep.subr.mxu0 0.0
    %247 = vmatpush1.msra.mxu0 0.0
    %248 = vmatprep.subr.mxu0 0.0
    %249 = vmatpush1.msra.mxu0 0.0
    %250 = vmatprep.subr.mxu0 0.0
    %251 = vmatpush1.msra.mxu0 0.0
    %252 = vmatprep.subr.mxu0 0.0
    %253 = vmatpush1.msra.mxu0 0.0
    %254 = vmatprep.subr.mxu0 0.0
    %255 = vmatpush1.msra.mxu0 0.0
    %256 = vmatprep.subr.mxu0 0.0
    %257 = vmatpush1.msra.mxu0 0.0
    %258 = vmatprep.subr.mxu0 0.0
    %259 = vmatpush1.msra.mxu0 0.0
    %260 = vmatprep.subr.mxu0 0.0
    %261 = vmatpush1.msra.mxu0 0.0
    %262 = vmatprep.subr.mxu0 0.0
    %263 = vmatpush1.msra.mxu0 0.0
    %264 = vmatprep.subr.mxu0 0.0
    %265 = vmatpush1.msra.mxu0 0.0
    %266 = vmatprep.subr.mxu0 0.0
    %267 = vmatpush1.msra.mxu0 0.0
    %268 = vmatprep.mubr.f32.mxu0 0.0
    %269 = vmatmul.mubr.f32.gmra.mrb[0].mxu0 %v180
    %v270 = vpop.f32.mrb[0].mxu0
    %v271 = vadd.f32 %v202, %v270
    %v272 = vpop.f32.mrb[0].mxu0
    %273 = vdwg.mxu0
    %274 = vst [vmem:[#allocation9] sm:$0xff] %v271
    // Predicated region
    $region38: #{_lambda_.1} parent=1 // pred_check
      _
    $region39: #{_lambda_.1} parent=1 // pred_check_branch
      %276 = sbr.rel (0) target = $region41
    $region40: #{_lambda_.1} parent=1 // pred_region
      %s278 = ssub.s32 128, 128
      %279 = vsyncadd [#allocation5], %s278
      %s281 = sshll.u32 [#allocation9], 4
      %s282 = int_to_ptr.vmem [resolvable:$true] %s281
      %284 = dma.vmem_to_hbm [thread:$0]  %s282, 128, %s5, [#allocation5]
    $region41: #{_lambda_.1} parent=1 // pred_fallthru
      _
    // Predicated region
    $region42: #{_lambda_.1} parent=1 // pred_check
      _
    $region43: #{_lambda_.1} parent=1 // pred_check_branch
      %286 = sbr.rel (0) target = $region45
    $region44: #{_lambda_.1} parent=1 // pred_region
      %s288 = ssub.s32 128, 128
      %289 = vsyncadd [#allocation11], %s288
      %s291 = sshll.u32 [#allocation10], 4
      %s292 = int_to_ptr.vmem [resolvable:$true] %s291
      %294 = dma.vmem_to_hbm [thread:$0]  %s292, 128, %s6, [#allocation11]
    $region45: #{_lambda_.1} parent=1 // pred_fallthru
      _
    // Predicated region
    $region46: #{_lambda_.1} parent=1 // pred_check
      _
    $region47: #{_lambda_.1} parent=1 // pred_check_branch
      %296 = sbr.rel (0) target = $region49
    $region48: #{_lambda_.1} parent=1 // pred_region
      %297 = dma.done [#allocation5], 128
    $region49: #{_lambda_.1} parent=1 // pred_fallthru
      _
    // Predicated region
    $region50: #{_lambda_.1} parent=1 // pred_check
      _
    $region51: #{_lambda_.1} parent=1 // pred_check_branch
      %299 = sbr.rel (0) target = $region53
    $region52: #{_lambda_.1} parent=1 // pred_region
      %300 = dma.done [#allocation11], 128
    $region53: #{_lambda_.1} parent=1 // pred_fallthru
      _
    %301 = vsyncpa [#allocation4], 1
    %302 = vsyncpa [#allocation7], 1
    %303 = vsyncpa [#allocation5], 1
    %304 = vsyncpa [#allocation11], 1

</llo_original>
